<compile_context>
chip_gen: v5e
topology: v5e:2x2
jax: 0.10.0
libtpu: 0.0.40
codegen_flags: <defaults>
</compile_context>

<pallas_src>
import functools

import jax
import jax.numpy as jnp
from jax import lax
from jax.experimental import pallas as pl
from jax.experimental.pallas import tpu as pltpu

# ----------------------------- configuration -------------------------------
B, C_IN, H, W = 2, 3, 16, 16          # input images  [B, C, H, W]
K = 3                                  # stem conv kernel (3x3, stride 1, pad 1)
F_STEM = 32                            # stem conv output channels
RED_DIM = 32                           # reduction_dim (whitening output)
NUM_CLASSES = 10
GEM_P = 3.0
GEM_EPS = 1e-6

HW = H * W                             # spatial positions per image (256)
CKK = C_IN * K * K                     # conv contraction dim (27)
CKK_PAD = 32                           # padded contraction dim; row CKK carries the bias
NC_PAD = 128                           # classifier cols padded to a full lane group
NEG_BIG = -1e30                        # CE padding (folded into classifier bias)


# ------------------------ fused forward kernel ------------------------------
def _cvnet_fused_kernel(*refs, tb, compute_loss):
    """One grid step == `tb` images.  All intermediates stay in vregs/VMEM."""
    if compute_loss:
        t_ref, p_ref, cw_ref, ww_ref, wb_ref, kw_ref, kb_ref, out_ref = refs
    else:
        p_ref, cw_ref, ww_ref, wb_ref, kw_ref, kb_ref, out_ref = refs

    # ---- backbone stem: conv3x3 (im2col matmul, bias folded in) + ReLU ----
    # bf16 MXU feed, f32 accumulate; y is lane-dense [F_STEM, tb*HW].
    y = jnp.dot(cw_ref[...], p_ref[...], preferred_element_type=jnp.float32)
    y = jnp.maximum(y, 0.0)

    # ---- GeM pooling (p=3), fused into the conv epilogue ----
    yc = jnp.maximum(y, GEM_EPS)                              # clamp(min=eps)
    y3 = (yc * yc * yc).reshape(F_STEM, tb, HW)
    pooled = jnp.sum(y3, axis=-1) * (1.0 / HW)                # [F_STEM, tb]
    gem = jnp.exp(jnp.log(pooled) * (1.0 / GEM_P))            # (.)^(1/p), pooled > 0

    # ---- whitening FC + L2 normalize (F.normalize) ----
    # Contract the feature axis of both operands -> batch-major [tb, RED_DIM]
    # (transposed-LHS matmul; the only place the tiny feature-major/batch-major
    # flip happens, on a [F_STEM, tb] tensor).
    wht = lax.dot_general(gem, ww_ref[...], (((0,), (0,)), ((), ())),
                          preferred_element_type=jnp.float32) + wb_ref[...]
    # NOTE: PyTorch F.normalize clamps ||x|| at 1e-12; rsqrt(sumsq + 1e-12)
    # differs only for near-zero descriptors.
    inv_n = lax.rsqrt(jnp.sum(wht * wht, axis=-1, keepdims=True) + 1e-12)
    desc = wht * inv_n                                        # [tb, RED_DIM]

    # ---- classifier (cols padded to NC_PAD; padded bias = -1e30) ----
    logits = jnp.dot(desc, kw_ref[...],
                     preferred_element_type=jnp.float32) + kb_ref[...]  # [tb, NC_PAD]

    if compute_loss:
        cls_idx = lax.broadcasted_iota(jnp.int32, (tb, NC_PAD), 1)
        row_idx = lax.broadcasted_iota(jnp.int32, (tb, NC_PAD), 0)
        # Padded columns hold -1e30 (from the bias), so no explicit mask needed.
        m = jnp.max(logits, axis=-1, keepdims=True)
        lse = jnp.log(jnp.sum(jnp.exp(logits - m), axis=-1, keepdims=True)) + m
        base = pl.program_id(0) * tb
        tgt = jnp.zeros((tb, NC_PAD), jnp.int32)
        for j in range(tb):                                   # tb is small & static
            tgt = jnp.where(row_idx == j, t_ref[base + j], tgt)   # SMEM scalar reads
        onehot = (cls_idx == tgt).astype(jnp.float32)
        tgt_logit = jnp.sum(onehot * logits, axis=-1, keepdims=True)
        loss_vec = lse - tgt_logit                            # [tb, 1] per-sample CE
        # Per-sample loss rides in padded column NUM_CLASSES of the logits
        # block -> single lane-dense output store, no extra writeback DMA.
        out = jnp.where(cls_idx == NUM_CLASSES, loss_vec, logits)
        out_ref[...] = out.astype(out_ref.dtype)
    else:
        out_ref[...] = logits.astype(out_ref.dtype)


# ------------------------------- specs --------------------------------------
def _const(shape):
    # whole weight/bias array, same block every grid step
    return pl.BlockSpec(shape, lambda i, *_: (0, 0))


def _in_specs(tb):
    return [
        pl.BlockSpec((CKK_PAD, tb * HW), lambda i, *_: (0, i)),  # patches^T (tb images)
        _const((F_STEM, CKK_PAD)),                               # conv weight^T (+bias col)
        _const((F_STEM, RED_DIM)),                               # whitening weight
        _const((1, RED_DIM)),                                    # whitening bias
        _const((RED_DIM, NC_PAD)),                               # classifier weight
        _const((1, NC_PAD)),                                     # classifier bias (pad=-1e30)
    ]


def _out_spec(tb):
    return pl.BlockSpec((tb, NC_PAD), lambda i, *_: (i, 0))


# --------------------------- pallas_call wrappers ----------------------------
def _cvnet_forward_train(patches_t, params, targets):
    bsz = targets.shape[0]
    tb = bsz                       # whole batch per step (on v7x use tb = bsz // 2)
    grid = (bsz // tb,)
    out = pl.pallas_call(
        functools.partial(_cvnet_fused_kernel, tb=tb, compute_loss=True),
        out_shape=jax.ShapeDtypeStruct((bsz, NC_PAD), jnp.float32),
        grid_spec=pltpu.PrefetchScalarGridSpec(
            num_scalar_prefetch=1,                    # targets -> SMEM
            grid=grid,
            in_specs=_in_specs(tb),
            out_specs=_out_spec(tb),
        ),
        compiler_params=pltpu.CompilerParams(dimension_semantics=("parallel",)),
    )(targets.astype(jnp.int32), patches_t,
      params["conv_w"], params["white_w"], params["white_b"],
      params["cls_w"], params["cls_b"])
    logits = out[:, :NUM_CLASSES]
    loss = jnp.mean(out[:, NUM_CLASSES])              # CrossEntropyLoss reduction='mean'
    return loss, logits


def _cvnet_forward_eval(patches_t, params, bsz):
    tb = bsz
    grid = (bsz // tb,)
    out = pl.pallas_call(
        functools.partial(_cvnet_fused_kernel, tb=tb, compute_loss=False),
        out_shape=jax.ShapeDtypeStruct((bsz, NC_PAD), jnp.float32),
        grid_spec=pltpu.PrefetchScalarGridSpec(
            num_scalar_prefetch=0,
            grid=grid,
            in_specs=_in_specs(tb),
            out_specs=_out_spec(tb),
        ),
        compiler_params=pltpu.CompilerParams(dimension_semantics=("parallel",)),
    )(patches_t,
      params["conv_w"], params["white_w"], params["white_b"],
      params["cls_w"], params["cls_b"])
    return out[:, :NUM_CLASSES]


# ------------------------------ glue (plain JAX) -----------------------------
def im2col_nchw_t(x, k=K, pad=1, rows_pad=CKK_PAD):
    """x: [B, C, H, W] -> patches^T [rows_pad, B*H*W] bf16; row order (C, kH, kW)
    (matching a PyTorch conv weight [F, C, kH, kW] flattened over its last three
    dims), row CKK set to 1.0 (bias row), column index = b*HW + hw."""
    b, c, h, w = x.shape
    xp = jnp.pad(x, ((0, 0), (0, 0), (pad, pad), (pad, pad)))
    cols = []
    for dy in range(k):
        for dx in range(k):
            cols.append(xp[:, :, dy:dy + h, dx:dx + w])       # [B, C, H, W]
    p = jnp.stack(cols, axis=2)                               # [B, C, k*k, H, W]
    p = p.reshape(b, c * k * k, h * w)                        # [B, CKK, HW]
    p = p.transpose(1, 0, 2).reshape(c * k * k, b * h * w)    # [CKK, B*HW]
    p = jnp.pad(p, ((0, rows_pad - c * k * k), (0, 0)))
    p = p.at[c * k * k].set(1.0)                              # bias row
    return p.astype(jnp.bfloat16)


def init_params(key):
    k1, k2, k3, k4, k5, k6 = jax.random.split(key, 6)
    conv_w = jax.random.normal(k1, (F_STEM, C_IN, K, K), jnp.float32) * 0.1
    conv_b = jax.random.normal(k2, (F_STEM,), jnp.float32) * 0.01
    white_w = jax.random.normal(k3, (F_STEM, RED_DIM), jnp.float32) * 0.1
    white_b = jax.random.normal(k4, (RED_DIM,), jnp.float32) * 0.01
    cls_w = jax.random.normal(k5, (RED_DIM, NUM_CLASSES), jnp.float32) * 0.1
    cls_b = jax.random.normal(k6, (NUM_CLASSES,), jnp.float32) * 0.01

    # conv weight flattened to [F, CKK], padded to CKK_PAD with the bias in col CKK
    cw = conv_w.reshape(F_STEM, CKK)
    cw = jnp.pad(cw, ((0, 0), (0, CKK_PAD - CKK)))
    cw = cw.at[:, CKK].set(conv_b)

    cls_w_pad = jnp.pad(cls_w, ((0, 0), (0, NC_PAD - NUM_CLASSES)))
    cls_b_pad = jnp.concatenate(
        [cls_b, jnp.full((NC_PAD - NUM_CLASSES,), NEG_BIG, jnp.float32)]
    ).reshape(1, NC_PAD)

    return dict(
        conv_w=cw.astype(jnp.bfloat16),       # [F_STEM, CKK_PAD]  (bf16 MXU feed)
        white_w=white_w,                      # [F_STEM, RED_DIM]
        white_b=white_b.reshape(1, RED_DIM),
        cls_w=cls_w_pad,                      # [RED_DIM, NC_PAD]
        cls_b=cls_b_pad,                      # [1, NC_PAD] (padding = -1e30)
    )


@functools.partial(jax.jit, static_argnames=("training",))
def cvnet_wrapper_forward(params, x, targets=None, training=True):
    """Mirrors CVNetWrapper.forward: (loss, logits) when training with targets,
    (None, logits) otherwise."""
    bsz = x.shape[0]
    patches_t = im2col_nchw_t(x)
    if training and targets is not None:
        return _cvnet_forward_train(patches_t, params, targets)
    return None, _cvnet_forward_eval(patches_t, params, bsz)


# ---------------------------------- main ------------------------------------
if __name__ == "__main__":
    key = jax.random.PRNGKey(0)
    kx, kt, kp = jax.random.split(key, 3)
    x = jax.random.normal(kx, (B, C_IN, H, W), jnp.float32)
    targets = jax.random.randint(kt, (B,), 0, NUM_CLASSES, jnp.int32)
    params = init_params(kp)

    loss, logits = cvnet_wrapper_forward(params, x, targets, training=True)
    jax.block_until_ready((loss, logits))
    assert logits.shape == (B, NUM_CLASSES)
    assert loss.shape == ()
    assert bool(jnp.isfinite(loss))
    assert bool(jnp.all(jnp.isfinite(logits)))

    none_loss, logits_eval = cvnet_wrapper_forward(params, x, None, training=False)
    jax.block_until_ready(logits_eval)
    assert none_loss is None and logits_eval.shape == (B, NUM_CLASSES)
    assert bool(jnp.all(jnp.isfinite(logits_eval)))

    print("KERNEL_OK")
</pallas_src>

<mosaic_0001>
module attributes {stable_mosaic.version = 11 : i64} {
  func.func @_cvnet_fused_kernel(%arg0: i32, %arg1: memref<2xi32, #tpu.memory_space<smem>>, %arg2: memref<32x512xbf16, #tpu.memory_space<vmem>>, %arg3: memref<32x32xbf16, #tpu.memory_space<vmem>>, %arg4: memref<32x32xf32, #tpu.memory_space<vmem>>, %arg5: memref<1x32xf32, #tpu.memory_space<vmem>>, %arg6: memref<32x128xf32, #tpu.memory_space<vmem>>, %arg7: memref<1x128xf32, #tpu.memory_space<vmem>>, %arg8: memref<2x128xf32, #tpu.memory_space<vmem>>) attributes {dimension_semantics = [#tpu.dimension_semantics<parallel>], iteration_bounds = array<i64: 1>, scalar_prefetch = 1 : i64, scratch_operands = 0 : i64, tpu.core_type = #tpu.core_type<tc>, window_params = [{transform_indices = @transform_0, window_bounds = array<i64: 32, 512>}, {pipeline_mode = #tpu.pipeline_mode<synchronous>, transform_indices = @transform_1, window_bounds = array<i64: 32, 32>}, {pipeline_mode = #tpu.pipeline_mode<synchronous>, transform_indices = @transform_2, window_bounds = array<i64: 32, 32>}, {pipeline_mode = #tpu.pipeline_mode<synchronous>, transform_indices = @transform_3, window_bounds = array<i64: 1, 32>}, {pipeline_mode = #tpu.pipeline_mode<synchronous>, transform_indices = @transform_4, window_bounds = array<i64: 32, 128>}, {pipeline_mode = #tpu.pipeline_mode<synchronous>, transform_indices = @transform_5, window_bounds = array<i64: 1, 128>}, {transform_indices = @transform_6, window_bounds = array<i64: 2, 128>}]} {
    %c0 = arith.constant 0 : index
    %c0_0 = arith.constant 0 : index
    %0 = vector.load %arg3[%c0, %c0_0] : memref<32x32xbf16, #tpu.memory_space<vmem>>, vector<32x32xbf16>
    %c0_1 = arith.constant 0 : index
    %c0_2 = arith.constant 0 : index
    %1 = vector.load %arg2[%c0_1, %c0_2] : memref<32x512xbf16, #tpu.memory_space<vmem>>, vector<32x512xbf16>
    %cst = arith.constant dense<0.000000e+00> : vector<32x512xf32>
    %2 = tpu.matmul %0, %1, %cst {dimension_numbers = #tpu.dot_dimension_numbers<[1], [0], [0], [1], [0, 0, 1, 1], [], []>} : vector<32x32xbf16>, vector<32x512xbf16>, vector<32x512xf32> -> vector<32x512xf32>
    %cst_3 = arith.constant 0.000000e+00 : f32
    %3 = vector.broadcast %cst_3 : f32 to vector<32x512xf32>
    %4 = arith.maximumf %2, %3 : vector<32x512xf32>
    %cst_4 = arith.constant 9.99999997E-7 : f32
    %5 = vector.broadcast %cst_4 : f32 to vector<32x512xf32>
    %6 = arith.maximumf %4, %5 : vector<32x512xf32>
    %7 = arith.mulf %6, %6 : vector<32x512xf32>
    %8 = arith.mulf %7, %6 : vector<32x512xf32>
    %9 = vector.shape_cast %8 : vector<32x512xf32> to vector<32x2x256xf32>
    %cst_5 = arith.constant dense<0.000000e+00> : vector<32x2xf32>
    %10 = vector.multi_reduction <add>, %9, %cst_5 [2] : vector<32x2x256xf32> to vector<32x2xf32>
    %cst_6 = arith.constant 3.906250e-03 : f32
    %11 = vector.broadcast %cst_6 : f32 to vector<32x2xf32>
    %12 = arith.mulf %10, %11 : vector<32x2xf32>
    %13 = math.log %12 : vector<32x2xf32>
    %cst_7 = arith.constant 0.333333343 : f32
    %14 = vector.broadcast %cst_7 : f32 to vector<32x2xf32>
    %15 = arith.mulf %13, %14 : vector<32x2xf32>
    %16 = math.exp %15 : vector<32x2xf32>
    %c0_8 = arith.constant 0 : index
    %c0_9 = arith.constant 0 : index
    %17 = vector.load %arg4[%c0_8, %c0_9] : memref<32x32xf32, #tpu.memory_space<vmem>>, vector<32x32xf32>
    %cst_10 = arith.constant dense<0.000000e+00> : vector<2x32xf32>
    %18 = tpu.matmul %16, %17, %cst_10 {dimension_numbers = #tpu.dot_dimension_numbers<[0], [0], [1], [1], [0, 1, 1, 1], [], []>} : vector<32x2xf32>, vector<32x32xf32>, vector<2x32xf32> -> vector<2x32xf32>
    %c0_11 = arith.constant 0 : index
    %c0_12 = arith.constant 0 : index
    %19 = vector.load %arg5[%c0_11, %c0_12] : memref<1x32xf32, #tpu.memory_space<vmem>>, vector<1x32xf32>
    %20 = vector.broadcast %19 : vector<1x32xf32> to vector<2x32xf32>
    %21 = arith.addf %18, %20 : vector<2x32xf32>
    %22 = arith.mulf %21, %21 : vector<2x32xf32>
    %cst_13 = arith.constant dense<0.000000e+00> : vector<2xf32>
    %23 = vector.multi_reduction <add>, %22, %cst_13 [1] : vector<2x32xf32> to vector<2xf32>
    %24 = vector.shape_cast %23 : vector<2xf32> to vector<2x1xf32>
    %cst_14 = arith.constant 9.99999996E-13 : f32
    %25 = vector.broadcast %cst_14 : f32 to vector<2x1xf32>
    %26 = arith.addf %24, %25 : vector<2x1xf32>
    %27 = math.rsqrt %26 : vector<2x1xf32>
    %28 = vector.broadcast %27 : vector<2x1xf32> to vector<2x32xf32>
    %29 = arith.mulf %21, %28 : vector<2x32xf32>
    %c0_15 = arith.constant 0 : index
    %c0_16 = arith.constant 0 : index
    %30 = vector.load %arg6[%c0_15, %c0_16] : memref<32x128xf32, #tpu.memory_space<vmem>>, vector<32x128xf32>
    %cst_17 = arith.constant dense<0.000000e+00> : vector<2x128xf32>
    %31 = tpu.matmul %29, %30, %cst_17 {dimension_numbers = #tpu.dot_dimension_numbers<[1], [0], [0], [1], [0, 0, 1, 1], [], []>} : vector<2x32xf32>, vector<32x128xf32>, vector<2x128xf32> -> vector<2x128xf32>
    %c0_18 = arith.constant 0 : index
    %c0_19 = arith.constant 0 : index
    %32 = vector.load %arg7[%c0_18, %c0_19] : memref<1x128xf32, #tpu.memory_space<vmem>>, vector<1x128xf32>
    %33 = vector.broadcast %32 : vector<1x128xf32> to vector<2x128xf32>
    %34 = arith.addf %31, %33 : vector<2x128xf32>
    %35 = tpu.iota {dimensions = array<i32: 1>} : vector<2x128xi32>
    %36 = tpu.iota {dimensions = array<i32: 0>} : vector<2x128xi32>
    %cst_20 = arith.constant dense<0xFF800000> : vector<2xf32>
    %37 = vector.multi_reduction <maximumf>, %34, %cst_20 [1] : vector<2x128xf32> to vector<2xf32>
    %38 = vector.shape_cast %37 : vector<2xf32> to vector<2x1xf32>
    %39 = vector.broadcast %38 : vector<2x1xf32> to vector<2x128xf32>
    %40 = arith.subf %34, %39 : vector<2x128xf32>
    %41 = math.exp %40 : vector<2x128xf32>
    %cst_21 = arith.constant dense<0.000000e+00> : vector<2xf32>
    %42 = vector.multi_reduction <add>, %41, %cst_21 [1] : vector<2x128xf32> to vector<2xf32>
    %43 = vector.shape_cast %42 : vector<2xf32> to vector<2x1xf32>
    %44 = math.log %43 : vector<2x1xf32>
    %45 = arith.addf %44, %38 : vector<2x1xf32>
    %c2_i32 = arith.constant 2 : i32
    %46 = arith.muli %arg0, %c2_i32 : i32
    %c0_i32 = arith.constant 0 : i32
    %47 = vector.broadcast %c0_i32 : i32 to vector<2x128xi32>
    %c0_i32_22 = arith.constant 0 : i32
    %48 = vector.broadcast %c0_i32_22 : i32 to vector<2x128xi32>
    %49 = arith.cmpi eq, %36, %48 : vector<2x128xi32>
    %c0_i32_23 = arith.constant 0 : i32
    %50 = arith.addi %46, %c0_i32_23 : i32
    %51 = arith.index_cast %50 : i32 to index
    %52 = memref.load %arg1[%51] : memref<2xi32, #tpu.memory_space<smem>>
    %53 = vector.broadcast %52 : i32 to vector<2x128xi32>
    %54 = arith.select %49, %53, %47 : vector<2x128xi1>, vector<2x128xi32>
    %c1_i32 = arith.constant 1 : i32
    %55 = vector.broadcast %c1_i32 : i32 to vector<2x128xi32>
    %56 = arith.cmpi eq, %36, %55 : vector<2x128xi32>
    %c1_i32_24 = arith.constant 1 : i32
    %57 = arith.addi %46, %c1_i32_24 : i32
    %58 = arith.index_cast %57 : i32 to index
    %59 = memref.load %arg1[%58] : memref<2xi32, #tpu.memory_space<smem>>
    %60 = vector.broadcast %59 : i32 to vector<2x128xi32>
    %61 = arith.select %56, %60, %54 : vector<2x128xi1>, vector<2x128xi32>
    %62 = arith.cmpi eq, %35, %61 : vector<2x128xi32>
    %63 = arith.extui %62 : vector<2x128xi1> to vector<2x128xi32>
    %64 = arith.sitofp %63 : vector<2x128xi32> to vector<2x128xf32>
    %65 = arith.mulf %64, %34 : vector<2x128xf32>
    %cst_25 = arith.constant dense<0.000000e+00> : vector<2xf32>
    %66 = vector.multi_reduction <add>, %65, %cst_25 [1] : vector<2x128xf32> to vector<2xf32>
    %67 = vector.shape_cast %66 : vector<2xf32> to vector<2x1xf32>
    %68 = arith.subf %45, %67 : vector<2x1xf32>
    %c10_i32 = arith.constant 10 : i32
    %69 = vector.broadcast %c10_i32 : i32 to vector<2x128xi32>
    %70 = arith.cmpi eq, %35, %69 : vector<2x128xi32>
    %71 = vector.shape_cast %68 : vector<2x1xf32> to vector<2x1xf32>
    %72 = vector.broadcast %71 : vector<2x1xf32> to vector<2x128xf32>
    %73 = arith.select %70, %72, %34 : vector<2x128xi1>, vector<2x128xf32>
    %c0_26 = arith.constant 0 : index
    %c0_27 = arith.constant 0 : index
    %74 = vector.load %arg8[%c0_26, %c0_27] : memref<2x128xf32, #tpu.memory_space<vmem>>, vector<2x128xf32>
    tpu.vector_store %arg8[%c0_26, %c0_27], %73 {strides = array<i32>} : memref<2x128xf32, #tpu.memory_space<vmem>>, vector<2x128xf32>,
    return
  }
  func.func @transform_0(%arg0: i32, %arg1: memref<2xi32, #tpu.memory_space<smem>>) -> (i32, i32) {
    %c0_i32 = arith.constant 0 : i32
    %c0_i32_0 = arith.constant 0 : i32
    return %c0_i32, %arg0 : i32, i32
  }
  func.func @transform_1(%arg0: i32, %arg1: memref<2xi32, #tpu.memory_space<smem>>) -> (i32, i32) {
    %c0_i32 = arith.constant 0 : i32
    %c0_i32_0 = arith.constant 0 : i32
    %c0_i32_1 = arith.constant 0 : i32
    return %c0_i32, %c0_i32_0 : i32, i32
  }
  func.func @transform_2(%arg0: i32, %arg1: memref<2xi32, #tpu.memory_space<smem>>) -> (i32, i32) {
    %c0_i32 = arith.constant 0 : i32
    %c0_i32_0 = arith.constant 0 : i32
    %c0_i32_1 = arith.constant 0 : i32
    return %c0_i32, %c0_i32_0 : i32, i32
  }
  func.func @transform_3(%arg0: i32, %arg1: memref<2xi32, #tpu.memory_space<smem>>) -> (i32, i32) {
    %c0_i32 = arith.constant 0 : i32
    %c0_i32_0 = arith.constant 0 : i32
    %c0_i32_1 = arith.constant 0 : i32
    return %c0_i32, %c0_i32_0 : i32, i32
  }
  func.func @transform_4(%arg0: i32, %arg1: memref<2xi32, #tpu.memory_space<smem>>) -> (i32, i32) {
    %c0_i32 = arith.constant 0 : i32
    %c0_i32_0 = arith.constant 0 : i32
    %c0_i32_1 = arith.constant 0 : i32
    return %c0_i32, %c0_i32_0 : i32, i32
  }
  func.func @transform_5(%arg0: i32, %arg1: memref<2xi32, #tpu.memory_space<smem>>) -> (i32, i32) {
    %c0_i32 = arith.constant 0 : i32
    %c0_i32_0 = arith.constant 0 : i32
    %c0_i32_1 = arith.constant 0 : i32
    return %c0_i32, %c0_i32_0 : i32, i32
  }
  func.func @transform_6(%arg0: i32, %arg1: memref<2xi32, #tpu.memory_space<smem>>) -> (i32, i32) {
    %c0_i32 = arith.constant 0 : i32
    %c0_i32_0 = arith.constant 0 : i32
    return %arg0, %c0_i32 : i32, i32
  }
}

</mosaic_0001>

<llo_original>
// kernel: cvnet_wrapper_forward.1
$region0: #{cvnet_wrapper_forward.1}
  #allocation0 [shape = 'u32[]', space=smem, size = 0x4, offset = 0x4, fixed_abs, tag = 'smem constant byte address 0x4 - core index']
  #allocation1 [shape = 'u32[72,128]{1,0:T(1,128)}', space=vmem, size = 0x9000, scoped, tag = 'internal scratch']
  #allocation2 [shape = 's32[1]{0}', space=sflag, size = 0x4, scoped, tag = 'scoped memory for cvnet_wrapper_forward.1']
  #allocation3 [shape = 'u8[512]{0}', space=smem, size = 0x200, scoped, tag = 'prefetched SMEM operand 0']
  %s0 = inlined_call_operand.vmem [shape: s32[2], index: 0, kind: input, shape index: {}]
  %s1 = inlined_call_operand.vmem [shape: bf16[32,512], index: 1, kind: input, shape index: {}]
  %s2 = inlined_call_operand.vmem [shape: bf16[32,32], index: 2, kind: input, shape index: {}]
  %s3 = inlined_call_operand.vmem [shape: f32[32,32], index: 3, kind: input, shape index: {}]
  %s4 = inlined_call_operand.vmem [shape: f32[1,32], index: 4, kind: input, shape index: {}]
  %s5 = inlined_call_operand.vmem [shape: f32[32,128], index: 5, kind: input, shape index: {}]
  %s6 = inlined_call_operand.vmem [shape: f32[1,128], index: 6, kind: input, shape index: {}]
  %s7 = inlined_call_operand.vmem [shape: f32[2,128], index: 7, kind: output, shape index: {}]
  %s8 = sld [smem:[#allocation0]]
  $region34: #{cvnet_wrapper_forward.1} parent=0
    _
  %s10 = ssub.s32 1, %s8
  %s11 = scalar_select 0, %s10, %s8
  %s13 = sshll.u32 %s0, 4
  %s14 = int_to_ptr.vmem [resolvable:$true] %s13
  %16 = dma.vmem_to_smem %s14, 16, [#allocation3], [#allocation2]
  %18 = dma.done [#allocation2], 16
  %19 = sfence
  // Predicated region
  $region2: #{cvnet_wrapper_forward.1} parent=0 // pred_check
    _
  $region3: #{cvnet_wrapper_forward.1} parent=0 // pred_check_branch
    %21 = sbr.rel (0) target = $region5
  $region4: #{cvnet_wrapper_forward.1} parent=0 // pred_region
    _
  $region5: #{cvnet_wrapper_forward.1} parent=0 // pred_fallthru
    _
  // Predicated region
  $region6: #{cvnet_wrapper_forward.1} parent=0 // pred_check
    _
  $region7: #{cvnet_wrapper_forward.1} parent=0 // pred_check_branch
    %23 = sbr.rel (0) target = $region9
  $region8: #{cvnet_wrapper_forward.1} parent=0 // pred_region
    _
  $region9: #{cvnet_wrapper_forward.1} parent=0 // pred_fallthru
    _
  // Predicated region
  $region10: #{cvnet_wrapper_forward.1} parent=0 // pred_check
    _
  $region11: #{cvnet_wrapper_forward.1} parent=0 // pred_check_branch
    %25 = sbr.rel (0) target = $region13
  $region12: #{cvnet_wrapper_forward.1} parent=0 // pred_region
    _
  $region13: #{cvnet_wrapper_forward.1} parent=0 // pred_fallthru
    _
  // Predicated region
  $region14: #{cvnet_wrapper_forward.1} parent=0 // pred_check
    _
  $region15: #{cvnet_wrapper_forward.1} parent=0 // pred_check_branch
    %27 = sbr.rel (0) target = $region17
  $region16: #{cvnet_wrapper_forward.1} parent=0 // pred_region
    _
  $region17: #{cvnet_wrapper_forward.1} parent=0 // pred_fallthru
    _
  // Predicated region
  $region18: #{cvnet_wrapper_forward.1} parent=0 // pred_check
    _
  $region19: #{cvnet_wrapper_forward.1} parent=0 // pred_check_branch
    %29 = sbr.rel (0) target = $region21
  $region20: #{cvnet_wrapper_forward.1} parent=0 // pred_region
    _
  $region21: #{cvnet_wrapper_forward.1} parent=0 // pred_fallthru
    _
  // Predicated region
  $region22: #{cvnet_wrapper_forward.1} parent=0 // pred_check
    _
  $region23: #{cvnet_wrapper_forward.1} parent=0 // pred_check_branch
    %31 = sbr.rel (0) target = $region25
  $region24: #{cvnet_wrapper_forward.1} parent=0 // pred_region
    _
  $region25: #{cvnet_wrapper_forward.1} parent=0 // pred_fallthru
    _
  %v33 = vld [vmem:[%s2] sm:$0xf]
  %v34 = vld [vmem:[%s2 + $0x4] sm:$0xf]
  %v35 = vld [vmem:[%s2 + $0x8] sm:$0xf]
  %v36 = vld [vmem:[%s2 + $0xc] sm:$0xf]
  %v37 = vld [vmem:[%s1] sm:$0xff]
  %v38 = vld [vmem:[%s1 + $0x8] sm:$0xff]
  %v39 = vld [vmem:[%s1 + $0x10] sm:$0xff]
  %v40 = vld [vmem:[%s1 + $0x18] sm:$0xff]
  %v41 = vld [vmem:[%s1 + $0x20] sm:$0xff]
  %v42 = vld [vmem:[%s1 + $0x28] sm:$0xff]
  %v43 = vld [vmem:[%s1 + $0x30] sm:$0xff]
  %v44 = vld [vmem:[%s1 + $0x38] sm:$0xff]
  %v49 = vunpack.c.l.b16 %v33
  %v50 = vunpack.c.l.b16 %v34
  %v51 = vunpack.c.l.b16 %v35
  %v52 = vunpack.c.l.b16 %v36
  %v53 = vpack.c.b16 %v50, %v49
  %v54 = vpack.c.b16 %v52, %v51
  %v63 = vunpack.c.l.b16 %v37
  %v64 = vunpack.c.h.b16 %v37
  %v65 = vunpack.c.l.b16 %v38
  %v66 = vunpack.c.h.b16 %v38
  %v67 = vunpack.c.l.b16 %v39
  %v68 = vunpack.c.h.b16 %v39
  %v69 = vunpack.c.l.b16 %v40
  %v70 = vunpack.c.h.b16 %v40
  %v71 = vunpack.c.l.b16 %v41
  %v72 = vunpack.c.h.b16 %v41
  %v73 = vunpack.c.l.b16 %v42
  %v74 = vunpack.c.h.b16 %v42
  %v75 = vunpack.c.l.b16 %v43
  %v76 = vunpack.c.h.b16 %v43
  %v77 = vunpack.c.l.b16 %v44
  %v78 = vunpack.c.h.b16 %v44
  %v79 = vpack.c.b16 %v67, %v63
  %v80 = vpack.c.b16 %v68, %v64
  %v81 = vpack.c.b16 %v69, %v65
  %v82 = vpack.c.b16 %v70, %v66
  %v83 = vpack.c.b16 %v75, %v71
  %v84 = vpack.c.b16 %v76, %v72
  %v85 = vpack.c.b16 %v77, %v73
  %v86 = vpack.c.b16 %v78, %v74
  %vm95 = vcmask 261120
  %v97 = vsel %vm95, %v53, 0
  %v100 = vsel %vm95, %v54, 0
  %102 = vmatpush.bf16.msra.mxu0 0
  %103 = vmatpush.bf16.msra.mxu0 0
  %104 = vmatpush.bf16.msra.mxu0 0
  %105 = vmatpush.bf16.msra.mxu0 0
  %106 = vmatpush.bf16.msra.mxu0 0
  %107 = vmatpush.bf16.msra.mxu0 0
  %108 = vmatpush.bf16.msra.mxu0 %v83
  %109 = vmatpush.bf16.msra.mxu0 %v79
  %110 = vmatmul.bf16.gmra.mxu0 %v97
  %v111 = vpop.f32.mrf.mxu0
  %v112 = vadd.f32 0.0, %v111
  %v113 = vpop.f32.mrf.mxu0
  %v114 = vadd.f32 0.0, %v113
  %115 = vmatmul.bf16.gmra.mxu0 %v100
  %v116 = vpop.f32.mrf.mxu0
  %v117 = vadd.f32 0.0, %v116
  %v118 = vpop.f32.mrf.mxu0
  %v119 = vadd.f32 0.0, %v118
  %120 = vdwg.mxu0
  %121 = vmatpush.bf16.msra.mxu0 0
  %122 = vmatpush.bf16.msra.mxu0 0
  %123 = vmatpush.bf16.msra.mxu0 0
  %124 = vmatpush.bf16.msra.mxu0 0
  %125 = vmatpush.bf16.msra.mxu0 0
  %126 = vmatpush.bf16.msra.mxu0 0
  %127 = vmatpush.bf16.msra.mxu0 %v84
  %128 = vmatpush.bf16.msra.mxu0 %v80
  %129 = vmatmul.bf16.gmra.mxu0 %v97
  %v130 = vpop.f32.mrf.mxu0
  %v131 = vadd.f32 0.0, %v130
  %v132 = vpop.f32.mrf.mxu0
  %v133 = vadd.f32 0.0, %v132
  %134 = vmatmul.bf16.gmra.mxu0 %v100
  %v135 = vpop.f32.mrf.mxu0
  %v136 = vadd.f32 0.0, %v135
  %v137 = vpop.f32.mrf.mxu0
  %v138 = vadd.f32 0.0, %v137
  %139 = vdwg.mxu0
  %140 = vmatpush.bf16.msra.mxu0 0
  %141 = vmatpush.bf16.msra.mxu0 0
  %142 = vmatpush.bf16.msra.mxu0 0
  %143 = vmatpush.bf16.msra.mxu0 0
  %144 = vmatpush.bf16.msra.mxu0 0
  %145 = vmatpush.bf16.msra.mxu0 0
  %146 = vmatpush.bf16.msra.mxu0 %v85
  %147 = vmatpush.bf16.msra.mxu0 %v81
  %148 = vmatmul.bf16.gmra.mxu0 %v97
  %v149 = vpop.f32.mrf.mxu0
  %v150 = vadd.f32 0.0, %v149
  %v151 = vpop.f32.mrf.mxu0
  %v152 = vadd.f32 0.0, %v151
  %153 = vmatmul.bf16.gmra.mxu0 %v100
  %v154 = vpop.f32.mrf.mxu0
  %v155 = vadd.f32 0.0, %v154
  %v156 = vpop.f32.mrf.mxu0
  %v157 = vadd.f32 0.0, %v156
  %158 = vdwg.mxu0
  %159 = vmatpush.bf16.msra.mxu0 0
  %160 = vmatpush.bf16.msra.mxu0 0
  %161 = vmatpush.bf16.msra.mxu0 0
  %162 = vmatpush.bf16.msra.mxu0 0
  %163 = vmatpush.bf16.msra.mxu0 0
  %164 = vmatpush.bf16.msra.mxu0 0
  %165 = vmatpush.bf16.msra.mxu0 %v86
  %166 = vmatpush.bf16.msra.mxu0 %v82
  %167 = vmatmul.bf16.gmra.mxu0 %v97
  %v168 = vpop.f32.mrf.mxu0
  %v169 = vadd.f32 0.0, %v168
  %v170 = vpop.f32.mrf.mxu0
  %v171 = vadd.f32 0.0, %v170
  %172 = vmatmul.bf16.gmra.mxu0 %v100
  %v173 = vpop.f32.mrf.mxu0
  %v174 = vadd.f32 0.0, %v173
  %v175 = vpop.f32.mrf.mxu0
  %v176 = vadd.f32 0.0, %v175
  %177 = vdwg.mxu0
  %v178 = vmax.f32 %v112, 0.0
  %v179 = vmax.f32 %v131, 0.0
  %v180 = vmax.f32 %v150, 0.0
  %v181 = vmax.f32 %v169, 0.0
  %v182 = vmax.f32 %v114, 0.0
  %v183 = vmax.f32 %v133, 0.0
  %v184 = vmax.f32 %v152, 0.0
  %v185 = vmax.f32 %v171, 0.0
  %v186 = vmax.f32 %v117, 0.0
  %v187 = vmax.f32 %v136, 0.0
  %v188 = vmax.f32 %v155, 0.0
  %v189 = vmax.f32 %v174, 0.0
  %v190 = vmax.f32 %v119, 0.0
  %v191 = vmax.f32 %v138, 0.0
  %v192 = vmax.f32 %v157, 0.0
  %v193 = vmax.f32 %v176, 0.0
  %v194 = vmax.f32 %v178, 1e-06
  %v195 = vmax.f32 %v179, 1e-06
  %v196 = vmax.f32 %v180, 1e-06
  %v197 = vmax.f32 %v181, 1e-06
  %v198 = vmax.f32 %v182, 1e-06
  %v199 = vmax.f32 %v183, 1e-06
  %v200 = vmax.f32 %v184, 1e-06
  %v201 = vmax.f32 %v185, 1e-06
  %v202 = vmax.f32 %v186, 1e-06
  %v203 = vmax.f32 %v187, 1e-06
  %v204 = vmax.f32 %v188, 1e-06
  %v205 = vmax.f32 %v189, 1e-06
  %v206 = vmax.f32 %v190, 1e-06
  %v207 = vmax.f32 %v191, 1e-06
  %v208 = vmax.f32 %v192, 1e-06
  %v209 = vmax.f32 %v193, 1e-06
  %v210 = vmul.f32 %v194, %v194
  %v211 = vmul.f32 %v195, %v195
  %v212 = vmul.f32 %v196, %v196
  %v213 = vmul.f32 %v197, %v197
  %v214 = vmul.f32 %v198, %v198
  %v215 = vmul.f32 %v199, %v199
  %v216 = vmul.f32 %v200, %v200
  %v217 = vmul.f32 %v201, %v201
  %v218 = vmul.f32 %v202, %v202
  %v219 = vmul.f32 %v203, %v203
  %v220 = vmul.f32 %v204, %v204
  %v221 = vmul.f32 %v205, %v205
  %v222 = vmul.f32 %v206, %v206
  %v223 = vmul.f32 %v207, %v207
  %v224 = vmul.f32 %v208, %v208
  %v225 = vmul.f32 %v209, %v209
  %v226 = vmul.f32 %v210, %v194
  %v227 = vmul.f32 %v211, %v195
  %v228 = vmul.f32 %v212, %v196
  %v229 = vmul.f32 %v213, %v197
  %v230 = vmul.f32 %v214, %v198
  %v231 = vmul.f32 %v215, %v199
  %v232 = vmul.f32 %v216, %v200
  %v233 = vmul.f32 %v217, %v201
  %v234 = vmul.f32 %v218, %v202
  %v235 = vmul.f32 %v219, %v203
  %v236 = vmul.f32 %v220, %v204
  %v237 = vmul.f32 %v221, %v205
  %v238 = vmul.f32 %v222, %v206
  %v239 = vmul.f32 %v223, %v207
  %v240 = vmul.f32 %v224, %v208
  %v241 = vmul.f32 %v225, %v209
  %v242 = vrot.slane %v226, 4
  %vm243 = vcmask 1047556
  %v244 = vsel %vm243, 0.0, %v242
  %v246 = vunpack.c.l.s4 1983009808
  %v247 = vunpack.c.0.s8 %v246
  %v248 = vperm.slane %v226, %v247
  %v250 = vunpack.c.l.s4 1983009808
  %v251 = vunpack.c.0.s8 %v250
  %v252 = vperm.slane %v244, %v251
  %v253 = vrot.slane %v228, 4
  %v254 = vsel %vm243, 0.0, %v253
  %v256 = vunpack.c.l.s4 1983009808
  %v257 = vunpack.c.0.s8 %v256
  %v258 = vperm.slane %v228, %v257
  %v260 = vunpack.c.l.s4 1983009808
  %v261 = vunpack.c.0.s8 %v260
  %v262 = vperm.slane %v254, %v261
  %v263 = vrot.slane %v258, 4
  %v264 = vsel %vm243, %v263, %v248
  %v265 = vrot.slane %v248, 4
  %v266 = vsel %vm243, %v258, %v265
  %v268 = vunpack.c.l.s4 1934713408
  %v269 = vunpack.c.0.s8 %v268
  %v270 = vperm.slane %v264, %v269
  %v272 = vunpack.c.l.s4 1934713408
  %v273 = vunpack.c.0.s8 %v272
  %v274 = vperm.slane %v266, %v273
  %v275 = vrot.slane %v262, 4
  %v276 = vsel %vm243, %v275, %v252
  %v277 = vrot.slane %v252, 4
  %v278 = vsel %vm243, %v262, %v277
  %v280 = vunpack.c.l.s4 1934713408
  %v281 = vunpack.c.0.s8 %v280
  %v282 = vperm.slane %v276, %v281
  %v284 = vunpack.c.l.s4 1934713408
  %v285 = vunpack.c.0.s8 %v284
  %v286 = vperm.slane %v278, %v285
  %v287 = vrot.slane %v270, 4
  %v288 = vsel %vm243, 0.0, %v287
  %v289 = vrot.slane %v274, 4
  %v290 = vsel %vm243, 0.0, %v289
  %v291 = vrot.slane %v282, 4
  %v292 = vsel %vm243, 0.0, %v291
  %v293 = vrot.slane %v286, 4
  %v294 = vsel %vm243, 0.0, %v293
  %v295 = vrot.slane %v230, 4
  %v296 = vsel %vm243, 0.0, %v295
  %v298 = vunpack.c.l.s4 1983009808
  %v299 = vunpack.c.0.s8 %v298
  %v300 = vperm.slane %v230, %v299
  %v302 = vunpack.c.l.s4 1983009808
  %v303 = vunpack.c.0.s8 %v302
  %v304 = vperm.slane %v296, %v303
  %v305 = vrot.slane %v232, 4
  %v306 = vsel %vm243, 0.0, %v305
  %v308 = vunpack.c.l.s4 1983009808
  %v309 = vunpack.c.0.s8 %v308
  %v310 = vperm.slane %v232, %v309
  %v312 = vunpack.c.l.s4 1983009808
  %v313 = vunpack.c.0.s8 %v312
  %v314 = vperm.slane %v306, %v313
  %v315 = vrot.slane %v310, 4
  %v316 = vsel %vm243, %v315, %v300
  %v317 = vrot.slane %v300, 4
  %v318 = vsel %vm243, %v310, %v317
  %v320 = vunpack.c.l.s4 1934713408
  %v321 = vunpack.c.0.s8 %v320
  %v322 = vperm.slane %v316, %v321
  %v324 = vunpack.c.l.s4 1934713408
  %v325 = vunpack.c.0.s8 %v324
  %v326 = vperm.slane %v318, %v325
  %v327 = vrot.slane %v314, 4
  %v328 = vsel %vm243, %v327, %v304
  %v329 = vrot.slane %v304, 4
  %v330 = vsel %vm243, %v314, %v329
  %v332 = vunpack.c.l.s4 1934713408
  %v333 = vunpack.c.0.s8 %v332
  %v334 = vperm.slane %v328, %v333
  %v336 = vunpack.c.l.s4 1934713408
  %v337 = vunpack.c.0.s8 %v336
  %v338 = vperm.slane %v330, %v337
  %v339 = vrot.slane %v322, 4
  %v340 = vsel %vm243, 0.0, %v339
  %v341 = vrot.slane %v326, 4
  %v342 = vsel %vm243, 0.0, %v341
  %v343 = vrot.slane %v334, 4
  %v344 = vsel %vm243, 0.0, %v343
  %v345 = vrot.slane %v338, 4
  %v346 = vsel %vm243, 0.0, %v345
  %v347 = vrot.slane %v234, 4
  %v348 = vsel %vm243, 0.0, %v347
  %v350 = vunpack.c.l.s4 1983009808
  %v351 = vunpack.c.0.s8 %v350
  %v352 = vperm.slane %v234, %v351
  %v354 = vunpack.c.l.s4 1983009808
  %v355 = vunpack.c.0.s8 %v354
  %v356 = vperm.slane %v348, %v355
  %v357 = vrot.slane %v236, 4
  %v358 = vsel %vm243, 0.0, %v357
  %v360 = vunpack.c.l.s4 1983009808
  %v361 = vunpack.c.0.s8 %v360
  %v362 = vperm.slane %v236, %v361
  %v364 = vunpack.c.l.s4 1983009808
  %v365 = vunpack.c.0.s8 %v364
  %v366 = vperm.slane %v358, %v365
  %v367 = vrot.slane %v362, 4
  %v368 = vsel %vm243, %v367, %v352
  %v369 = vrot.slane %v352, 4
  %v370 = vsel %vm243, %v362, %v369
  %v372 = vunpack.c.l.s4 1934713408
  %v373 = vunpack.c.0.s8 %v372
  %v374 = vperm.slane %v368, %v373
  %v376 = vunpack.c.l.s4 1934713408
  %v377 = vunpack.c.0.s8 %v376
  %v378 = vperm.slane %v370, %v377
  %v379 = vrot.slane %v366, 4
  %v380 = vsel %vm243, %v379, %v356
  %v381 = vrot.slane %v356, 4
  %v382 = vsel %vm243, %v366, %v381
  %v384 = vunpack.c.l.s4 1934713408
  %v385 = vunpack.c.0.s8 %v384
  %v386 = vperm.slane %v380, %v385
  %v388 = vunpack.c.l.s4 1934713408
  %v389 = vunpack.c.0.s8 %v388
  %v390 = vperm.slane %v382, %v389
  %v391 = vrot.slane %v374, 4
  %v392 = vsel %vm243, 0.0, %v391
  %v393 = vrot.slane %v378, 4
  %v394 = vsel %vm243, 0.0, %v393
  %v395 = vrot.slane %v386, 4
  %v396 = vsel %vm243, 0.0, %v395
  %v397 = vrot.slane %v390, 4
  %v398 = vsel %vm243, 0.0, %v397
  %v399 = vrot.slane %v238, 4
  %v400 = vsel %vm243, 0.0, %v399
  %v402 = vunpack.c.l.s4 1983009808
  %v403 = vunpack.c.0.s8 %v402
  %v404 = vperm.slane %v238, %v403
  %v406 = vunpack.c.l.s4 1983009808
  %v407 = vunpack.c.0.s8 %v406
  %v408 = vperm.slane %v400, %v407
  %v409 = vrot.slane %v240, 4
  %v410 = vsel %vm243, 0.0, %v409
  %v412 = vunpack.c.l.s4 1983009808
  %v413 = vunpack.c.0.s8 %v412
  %v414 = vperm.slane %v240, %v413
  %v416 = vunpack.c.l.s4 1983009808
  %v417 = vunpack.c.0.s8 %v416
  %v418 = vperm.slane %v410, %v417
  %v419 = vrot.slane %v414, 4
  %v420 = vsel %vm243, %v419, %v404
  %v421 = vrot.slane %v404, 4
  %v422 = vsel %vm243, %v414, %v421
  %v424 = vunpack.c.l.s4 1934713408
  %v425 = vunpack.c.0.s8 %v424
  %v426 = vperm.slane %v420, %v425
  %v428 = vunpack.c.l.s4 1934713408
  %v429 = vunpack.c.0.s8 %v428
  %v430 = vperm.slane %v422, %v429
  %v431 = vrot.slane %v418, 4
  %v432 = vsel %vm243, %v431, %v408
  %v433 = vrot.slane %v408, 4
  %v434 = vsel %vm243, %v418, %v433
  %v436 = vunpack.c.l.s4 1934713408
  %v437 = vunpack.c.0.s8 %v436
  %v438 = vperm.slane %v432, %v437
  %v440 = vunpack.c.l.s4 1934713408
  %v441 = vunpack.c.0.s8 %v440
  %v442 = vperm.slane %v434, %v441
  %v443 = vrot.slane %v426, 4
  %v444 = vsel %vm243, 0.0, %v443
  %v445 = vrot.slane %v430, 4
  %v446 = vsel %vm243, 0.0, %v445
  %v447 = vrot.slane %v438, 4
  %v448 = vsel %vm243, 0.0, %v447
  %v449 = vrot.slane %v442, 4
  %v450 = vsel %vm243, 0.0, %v449
  %v451 = vrot.slane %v227, 4
  %v452 = vsel %vm243, 0.0, %v451
  %v454 = vunpack.c.l.s4 1983009808
  %v455 = vunpack.c.0.s8 %v454
  %v456 = vperm.slane %v227, %v455
  %v458 = vunpack.c.l.s4 1983009808
  %v459 = vunpack.c.0.s8 %v458
  %v460 = vperm.slane %v452, %v459
  %v461 = vrot.slane %v229, 4
  %v462 = vsel %vm243, 0.0, %v461
  %v464 = vunpack.c.l.s4 1983009808
  %v465 = vunpack.c.0.s8 %v464
  %v466 = vperm.slane %v229, %v465
  %v468 = vunpack.c.l.s4 1983009808
  %v469 = vunpack.c.0.s8 %v468
  %v470 = vperm.slane %v462, %v469
  %v471 = vrot.slane %v466, 4
  %v472 = vsel %vm243, %v471, %v456
  %v473 = vrot.slane %v456, 4
  %v474 = vsel %vm243, %v466, %v473
  %v476 = vunpack.c.l.s4 1934713408
  %v477 = vunpack.c.0.s8 %v476
  %v478 = vperm.slane %v472, %v477
  %v480 = vunpack.c.l.s4 1934713408
  %v481 = vunpack.c.0.s8 %v480
  %v482 = vperm.slane %v474, %v481
  %v483 = vrot.slane %v470, 4
  %v484 = vsel %vm243, %v483, %v460
  %v485 = vrot.slane %v460, 4
  %v486 = vsel %vm243, %v470, %v485
  %v488 = vunpack.c.l.s4 1934713408
  %v489 = vunpack.c.0.s8 %v488
  %v490 = vperm.slane %v484, %v489
  %v492 = vunpack.c.l.s4 1934713408
  %v493 = vunpack.c.0.s8 %v492
  %v494 = vperm.slane %v486, %v493
  %v495 = vrot.slane %v478, 4
  %v496 = vsel %vm243, 0.0, %v495
  %v497 = vrot.slane %v482, 4
  %v498 = vsel %vm243, 0.0, %v497
  %v499 = vrot.slane %v490, 4
  %v500 = vsel %vm243, 0.0, %v499
  %v501 = vrot.slane %v494, 4
  %v502 = vsel %vm243, 0.0, %v501
  %v503 = vrot.slane %v231, 4
  %v504 = vsel %vm243, 0.0, %v503
  %v506 = vunpack.c.l.s4 1983009808
  %v507 = vunpack.c.0.s8 %v506
  %v508 = vperm.slane %v231, %v507
  %v510 = vunpack.c.l.s4 1983009808
  %v511 = vunpack.c.0.s8 %v510
  %v512 = vperm.slane %v504, %v511
  %v513 = vrot.slane %v233, 4
  %v514 = vsel %vm243, 0.0, %v513
  %v516 = vunpack.c.l.s4 1983009808
  %v517 = vunpack.c.0.s8 %v516
  %v518 = vperm.slane %v233, %v517
  %v520 = vunpack.c.l.s4 1983009808
  %v521 = vunpack.c.0.s8 %v520
  %v522 = vperm.slane %v514, %v521
  %v523 = vrot.slane %v518, 4
  %v524 = vsel %vm243, %v523, %v508
  %v525 = vrot.slane %v508, 4
  %v526 = vsel %vm243, %v518, %v525
  %v528 = vunpack.c.l.s4 1934713408
  %v529 = vunpack.c.0.s8 %v528
  %v530 = vperm.slane %v524, %v529
  %v532 = vunpack.c.l.s4 1934713408
  %v533 = vunpack.c.0.s8 %v532
  %v534 = vperm.slane %v526, %v533
  %v535 = vrot.slane %v522, 4
  %v536 = vsel %vm243, %v535, %v512
  %v537 = vrot.slane %v512, 4
  %v538 = vsel %vm243, %v522, %v537
  %v540 = vunpack.c.l.s4 1934713408
  %v541 = vunpack.c.0.s8 %v540
  %v542 = vperm.slane %v536, %v541
  %v544 = vunpack.c.l.s4 1934713408
  %v545 = vunpack.c.0.s8 %v544
  %v546 = vperm.slane %v538, %v545
  %v547 = vrot.slane %v530, 4
  %v548 = vsel %vm243, 0.0, %v547
  %v549 = vrot.slane %v534, 4
  %v550 = vsel %vm243, 0.0, %v549
  %v551 = vrot.slane %v542, 4
  %v552 = vsel %vm243, 0.0, %v551
  %v553 = vrot.slane %v546, 4
  %v554 = vsel %vm243, 0.0, %v553
  %v555 = vrot.slane %v235, 4
  %v556 = vsel %vm243, 0.0, %v555
  %v558 = vunpack.c.l.s4 1983009808
  %v559 = vunpack.c.0.s8 %v558
  %v560 = vperm.slane %v235, %v559
  %v562 = vunpack.c.l.s4 1983009808
  %v563 = vunpack.c.0.s8 %v562
  %v564 = vperm.slane %v556, %v563
  %v565 = vrot.slane %v237, 4
  %v566 = vsel %vm243, 0.0, %v565
  %v568 = vunpack.c.l.s4 1983009808
  %v569 = vunpack.c.0.s8 %v568
  %v570 = vperm.slane %v237, %v569
  %v572 = vunpack.c.l.s4 1983009808
  %v573 = vunpack.c.0.s8 %v572
  %v574 = vperm.slane %v566, %v573
  %v575 = vrot.slane %v570, 4
  %v576 = vsel %vm243, %v575, %v560
  %v577 = vrot.slane %v560, 4
  %v578 = vsel %vm243, %v570, %v577
  %v580 = vunpack.c.l.s4 1934713408
  %v581 = vunpack.c.0.s8 %v580
  %v582 = vperm.slane %v576, %v581
  %v584 = vunpack.c.l.s4 1934713408
  %v585 = vunpack.c.0.s8 %v584
  %v586 = vperm.slane %v578, %v585
  %v587 = vrot.slane %v574, 4
  %v588 = vsel %vm243, %v587, %v564
  %v589 = vrot.slane %v564, 4
  %v590 = vsel %vm243, %v574, %v589
  %v592 = vunpack.c.l.s4 1934713408
  %v593 = vunpack.c.0.s8 %v592
  %v594 = vperm.slane %v588, %v593
  %v596 = vunpack.c.l.s4 1934713408
  %v597 = vunpack.c.0.s8 %v596
  %v598 = vperm.slane %v590, %v597
  %v599 = vrot.slane %v582, 4
  %v600 = vsel %vm243, 0.0, %v599
  %v601 = vrot.slane %v586, 4
  %v602 = vsel %vm243, 0.0, %v601
  %v603 = vrot.slane %v594, 4
  %v604 = vsel %vm243, 0.0, %v603
  %v605 = vrot.slane %v598, 4
  %v606 = vsel %vm243, 0.0, %v605
  %v607 = vrot.slane %v239, 4
  %v608 = vsel %vm243, 0.0, %v607
  %v610 = vunpack.c.l.s4 1983009808
  %v611 = vunpack.c.0.s8 %v610
  %v612 = vperm.slane %v239, %v611
  %v614 = vunpack.c.l.s4 1983009808
  %v615 = vunpack.c.0.s8 %v614
  %v616 = vperm.slane %v608, %v615
  %v617 = vrot.slane %v241, 4
  %v618 = vsel %vm243, 0.0, %v617
  %v620 = vunpack.c.l.s4 1983009808
  %v621 = vunpack.c.0.s8 %v620
  %v622 = vperm.slane %v241, %v621
  %v624 = vunpack.c.l.s4 1983009808
  %v625 = vunpack.c.0.s8 %v624
  %v626 = vperm.slane %v618, %v625
  %v627 = vrot.slane %v622, 4
  %v628 = vsel %vm243, %v627, %v612
  %v629 = vrot.slane %v612, 4
  %v630 = vsel %vm243, %v622, %v629
  %v632 = vunpack.c.l.s4 1934713408
  %v633 = vunpack.c.0.s8 %v632
  %v634 = vperm.slane %v628, %v633
  %v636 = vunpack.c.l.s4 1934713408
  %v637 = vunpack.c.0.s8 %v636
  %v638 = vperm.slane %v630, %v637
  %v639 = vrot.slane %v626, 4
  %v640 = vsel %vm243, %v639, %v616
  %v641 = vrot.slane %v616, 4
  %v642 = vsel %vm243, %v626, %v641
  %v644 = vunpack.c.l.s4 1934713408
  %v645 = vunpack.c.0.s8 %v644
  %v646 = vperm.slane %v640, %v645
  %v648 = vunpack.c.l.s4 1934713408
  %v649 = vunpack.c.0.s8 %v648
  %v650 = vperm.slane %v642, %v649
  %v651 = vrot.slane %v634, 4
  %v652 = vsel %vm243, 0.0, %v651
  %v653 = vrot.slane %v638, 4
  %v654 = vsel %vm243, 0.0, %v653
  %v655 = vrot.slane %v646, 4
  %v656 = vsel %vm243, 0.0, %v655
  %v657 = vrot.slane %v650, 4
  %v658 = vsel %vm243, 0.0, %v657
  %vm659 = vcmask 1041408
  %v660 = vsel %vm659, %v270, 0.0
  %v661 = vsel %vm659, %v478, 0.0
  %v662 = vadd.f32 %v660, %v661
  %663 = vadd.xlane.f32.xlu0 %v662
  %v664 = vpop.xlane.xlu0 %663
  %v665 = vsel %vm659, %v288, 0.0
  %v666 = vsel %vm659, %v496, 0.0
  %v667 = vadd.f32 %v665, %v666
  %668 = vadd.xlane.f32.xlu0 %v667
  %v669 = vpop.xlane.xlu0 %668
  %v670 = vsel %vm659, %v274, 0.0
  %v671 = vsel %vm659, %v482, 0.0
  %v672 = vadd.f32 %v670, %v671
  %673 = vadd.xlane.f32.xlu0 %v672
  %v674 = vpop.xlane.xlu0 %673
  %v675 = vsel %vm659, %v290, 0.0
  %v676 = vsel %vm659, %v498, 0.0
  %v677 = vadd.f32 %v675, %v676
  %678 = vadd.xlane.f32.xlu0 %v677
  %v679 = vpop.xlane.xlu0 %678
  %v680 = vsel %vm659, %v282, 0.0
  %v681 = vsel %vm659, %v490, 0.0
  %v682 = vadd.f32 %v680, %v681
  %683 = vadd.xlane.f32.xlu0 %v682
  %v684 = vpop.xlane.xlu0 %683
  %v685 = vsel %vm659, %v292, 0.0
  %v686 = vsel %vm659, %v500, 0.0
  %v687 = vadd.f32 %v685, %v686
  %688 = vadd.xlane.f32.xlu0 %v687
  %v689 = vpop.xlane.xlu0 %688
  %v690 = vsel %vm659, %v286, 0.0
  %v691 = vsel %vm659, %v494, 0.0
  %v692 = vadd.f32 %v690, %v691
  %693 = vadd.xlane.f32.xlu0 %v692
  %v694 = vpop.xlane.xlu0 %693
  %v695 = vsel %vm659, %v294, 0.0
  %v696 = vsel %vm659, %v502, 0.0
  %v697 = vadd.f32 %v695, %v696
  %698 = vadd.xlane.f32.xlu0 %v697
  %v699 = vpop.xlane.xlu0 %698
  %v700 = vsel %vm659, %v322, 0.0
  %v701 = vsel %vm659, %v530, 0.0
  %v702 = vadd.f32 %v700, %v701
  %703 = vadd.xlane.f32.xlu0 %v702
  %v704 = vpop.xlane.xlu0 %703
  %v705 = vsel %vm659, %v340, 0.0
  %v706 = vsel %vm659, %v548, 0.0
  %v707 = vadd.f32 %v705, %v706
  %708 = vadd.xlane.f32.xlu0 %v707
  %v709 = vpop.xlane.xlu0 %708
  %v710 = vsel %vm659, %v326, 0.0
  %v711 = vsel %vm659, %v534, 0.0
  %v712 = vadd.f32 %v710, %v711
  %713 = vadd.xlane.f32.xlu0 %v712
  %v714 = vpop.xlane.xlu0 %713
  %v715 = vsel %vm659, %v342, 0.0
  %v716 = vsel %vm659, %v550, 0.0
  %v717 = vadd.f32 %v715, %v716
  %718 = vadd.xlane.f32.xlu0 %v717
  %v719 = vpop.xlane.xlu0 %718
  %v720 = vsel %vm659, %v334, 0.0
  %v721 = vsel %vm659, %v542, 0.0
  %v722 = vadd.f32 %v720, %v721
  %723 = vadd.xlane.f32.xlu0 %v722
  %v724 = vpop.xlane.xlu0 %723
  %v725 = vsel %vm659, %v344, 0.0
  %v726 = vsel %vm659, %v552, 0.0
  %v727 = vadd.f32 %v725, %v726
  %728 = vadd.xlane.f32.xlu0 %v727
  %v729 = vpop.xlane.xlu0 %728
  %v730 = vsel %vm659, %v338, 0.0
  %v731 = vsel %vm659, %v546, 0.0
  %v732 = vadd.f32 %v730, %v731
  %733 = vadd.xlane.f32.xlu0 %v732
  %v734 = vpop.xlane.xlu0 %733
  %v735 = vsel %vm659, %v346, 0.0
  %v736 = vsel %vm659, %v554, 0.0
  %v737 = vadd.f32 %v735, %v736
  %738 = vadd.xlane.f32.xlu0 %v737
  %v739 = vpop.xlane.xlu0 %738
  %v740 = vsel %vm659, %v374, 0.0
  %v741 = vsel %vm659, %v582, 0.0
  %v742 = vadd.f32 %v740, %v741
  %743 = vadd.xlane.f32.xlu0 %v742
  %v744 = vpop.xlane.xlu0 %743
  %v745 = vsel %vm659, %v392, 0.0
  %v746 = vsel %vm659, %v600, 0.0
  %v747 = vadd.f32 %v745, %v746
  %748 = vadd.xlane.f32.xlu0 %v747
  %v749 = vpop.xlane.xlu0 %748
  %v750 = vsel %vm659, %v378, 0.0
  %v751 = vsel %vm659, %v586, 0.0
  %v752 = vadd.f32 %v750, %v751
  %753 = vadd.xlane.f32.xlu0 %v752
  %v754 = vpop.xlane.xlu0 %753
  %v755 = vsel %vm659, %v394, 0.0
  %v756 = vsel %vm659, %v602, 0.0
  %v757 = vadd.f32 %v755, %v756
  %758 = vadd.xlane.f32.xlu0 %v757
  %v759 = vpop.xlane.xlu0 %758
  %v760 = vsel %vm659, %v386, 0.0
  %v761 = vsel %vm659, %v594, 0.0
  %v762 = vadd.f32 %v760, %v761
  %763 = vadd.xlane.f32.xlu0 %v762
  %v764 = vpop.xlane.xlu0 %763
  %v765 = vsel %vm659, %v396, 0.0
  %v766 = vsel %vm659, %v604, 0.0
  %v767 = vadd.f32 %v765, %v766
  %768 = vadd.xlane.f32.xlu0 %v767
  %v769 = vpop.xlane.xlu0 %768
  %v770 = vsel %vm659, %v390, 0.0
  %v771 = vsel %vm659, %v598, 0.0
  %v772 = vadd.f32 %v770, %v771
  %773 = vadd.xlane.f32.xlu0 %v772
  %v774 = vpop.xlane.xlu0 %773
  %v775 = vsel %vm659, %v398, 0.0
  %v776 = vsel %vm659, %v606, 0.0
  %v777 = vadd.f32 %v775, %v776
  %778 = vadd.xlane.f32.xlu0 %v777
  %v779 = vpop.xlane.xlu0 %778
  %v780 = vsel %vm659, %v426, 0.0
  %v781 = vsel %vm659, %v634, 0.0
  %v782 = vadd.f32 %v780, %v781
  %783 = vadd.xlane.f32.xlu0 %v782
  %v784 = vpop.xlane.xlu0 %783
  %v785 = vsel %vm659, %v444, 0.0
  %v786 = vsel %vm659, %v652, 0.0
  %v787 = vadd.f32 %v785, %v786
  %788 = vadd.xlane.f32.xlu0 %v787
  %v789 = vpop.xlane.xlu0 %788
  %v790 = vsel %vm659, %v430, 0.0
  %v791 = vsel %vm659, %v638, 0.0
  %v792 = vadd.f32 %v790, %v791
  %793 = vadd.xlane.f32.xlu0 %v792
  %v794 = vpop.xlane.xlu0 %793
  %v795 = vsel %vm659, %v446, 0.0
  %v796 = vsel %vm659, %v654, 0.0
  %v797 = vadd.f32 %v795, %v796
  %798 = vadd.xlane.f32.xlu0 %v797
  %v799 = vpop.xlane.xlu0 %798
  %v800 = vsel %vm659, %v438, 0.0
  %v801 = vsel %vm659, %v646, 0.0
  %v802 = vadd.f32 %v800, %v801
  %803 = vadd.xlane.f32.xlu0 %v802
  %v804 = vpop.xlane.xlu0 %803
  %v805 = vsel %vm659, %v448, 0.0
  %v806 = vsel %vm659, %v656, 0.0
  %v807 = vadd.f32 %v805, %v806
  %808 = vadd.xlane.f32.xlu0 %v807
  %v809 = vpop.xlane.xlu0 %808
  %v810 = vsel %vm659, %v442, 0.0
  %v811 = vsel %vm659, %v650, 0.0
  %v812 = vadd.f32 %v810, %v811
  %813 = vadd.xlane.f32.xlu0 %v812
  %v814 = vpop.xlane.xlu0 %813
  %v815 = vsel %vm659, %v450, 0.0
  %v816 = vsel %vm659, %v658, 0.0
  %v817 = vadd.f32 %v815, %v816
  %818 = vadd.xlane.f32.xlu0 %v817
  %v819 = vpop.xlane.xlu0 %818
  %v820 = vmul.f32 %v664, 0.00390625
  %v821 = vmul.f32 %v669, 0.00390625
  %v822 = vmul.f32 %v674, 0.00390625
  %v823 = vmul.f32 %v679, 0.00390625
  %v824 = vmul.f32 %v684, 0.00390625
  %v825 = vmul.f32 %v689, 0.00390625
  %v826 = vmul.f32 %v694, 0.00390625
  %v827 = vmul.f32 %v699, 0.00390625
  %v828 = vmul.f32 %v704, 0.00390625
  %v829 = vmul.f32 %v709, 0.00390625
  %v830 = vmul.f32 %v714, 0.00390625
  %v831 = vmul.f32 %v719, 0.00390625
  %v832 = vmul.f32 %v724, 0.00390625
  %v833 = vmul.f32 %v729, 0.00390625
  %v834 = vmul.f32 %v734, 0.00390625
  %v835 = vmul.f32 %v739, 0.00390625
  %v836 = vmul.f32 %v744, 0.00390625
  %v837 = vmul.f32 %v749, 0.00390625
  %v838 = vmul.f32 %v754, 0.00390625
  %v839 = vmul.f32 %v759, 0.00390625
  %v840 = vmul.f32 %v764, 0.00390625
  %v841 = vmul.f32 %v769, 0.00390625
  %v842 = vmul.f32 %v774, 0.00390625
  %v843 = vmul.f32 %v779, 0.00390625
  %v844 = vmul.f32 %v784, 0.00390625
  %v845 = vmul.f32 %v789, 0.00390625
  %v846 = vmul.f32 %v794, 0.00390625
  %v847 = vmul.f32 %v799, 0.00390625
  %v848 = vmul.f32 %v804, 0.00390625
  %v849 = vmul.f32 %v809, 0.00390625
  %v850 = vmul.f32 %v814, 0.00390625
  %v851 = vmul.f32 %v819, 0.00390625
  %v852 = vlog2.pop %v820
  %v853 = vmul.f32 %v852, 0.6931472
  %v854 = vlog2.pop %v821
  %v855 = vmul.f32 %v854, 0.6931472
  %v856 = vlog2.pop %v822
  %v857 = vmul.f32 %v856, 0.6931472
  %v858 = vlog2.pop %v823
  %v859 = vmul.f32 %v858, 0.6931472
  %v860 = vlog2.pop %v824
  %v861 = vmul.f32 %v860, 0.6931472
  %v862 = vlog2.pop %v825
  %v863 = vmul.f32 %v862, 0.6931472
  %v864 = vlog2.pop %v826
  %v865 = vmul.f32 %v864, 0.6931472
  %v866 = vlog2.pop %v827
  %v867 = vmul.f32 %v866, 0.6931472
  %v868 = vlog2.pop %v828
  %v869 = vmul.f32 %v868, 0.6931472
  %v870 = vlog2.pop %v829
  %v871 = vmul.f32 %v870, 0.6931472
  %v872 = vlog2.pop %v830
  %v873 = vmul.f32 %v872, 0.6931472
  %v874 = vlog2.pop %v831
  %v875 = vmul.f32 %v874, 0.6931472
  %v876 = vlog2.pop %v832
  %v877 = vmul.f32 %v876, 0.6931472
  %v878 = vlog2.pop %v833
  %v879 = vmul.f32 %v878, 0.6931472
  %v880 = vlog2.pop %v834
  %v881 = vmul.f32 %v880, 0.6931472
  %v882 = vlog2.pop %v835
  %v883 = vmul.f32 %v882, 0.6931472
  %v884 = vlog2.pop %v836
  %v885 = vmul.f32 %v884, 0.6931472
  %v886 = vlog2.pop %v837
  %v887 = vmul.f32 %v886, 0.6931472
  %v888 = vlog2.pop %v838
  %v889 = vmul.f32 %v888, 0.6931472
  %v890 = vlog2.pop %v839
  %v891 = vmul.f32 %v890, 0.6931472
  %v892 = vlog2.pop %v840
  %v893 = vmul.f32 %v892, 0.6931472
  %v894 = vlog2.pop %v841
  %v895 = vmul.f32 %v894, 0.6931472
  %v896 = vlog2.pop %v842
  %v897 = vmul.f32 %v896, 0.6931472
  %v898 = vlog2.pop %v843
  %v899 = vmul.f32 %v898, 0.6931472
  %v900 = vlog2.pop %v844
  %v901 = vmul.f32 %v900, 0.6931472
  %v902 = vlog2.pop %v845
  %v903 = vmul.f32 %v902, 0.6931472
  %v904 = vlog2.pop %v846
  %v905 = vmul.f32 %v904, 0.6931472
  %v906 = vlog2.pop %v847
  %v907 = vmul.f32 %v906, 0.6931472
  %v908 = vlog2.pop %v848
  %v909 = vmul.f32 %v908, 0.6931472
  %v910 = vlog2.pop %v849
  %v911 = vmul.f32 %v910, 0.6931472
  %v912 = vlog2.pop %v850
  %v913 = vmul.f32 %v912, 0.6931472
  %v914 = vlog2.pop %v851
  %v915 = vmul.f32 %v914, 0.6931472
  %v916 = vmul.f32 %v853, 0.33333334
  %v917 = vmul.f32 %v855, 0.33333334
  %v918 = vmul.f32 %v857, 0.33333334
  %v919 = vmul.f32 %v859, 0.33333334
  %v920 = vmul.f32 %v861, 0.33333334
  %v921 = vmul.f32 %v863, 0.33333334
  %v922 = vmul.f32 %v865, 0.33333334
  %v923 = vmul.f32 %v867, 0.33333334
  %v924 = vmul.f32 %v869, 0.33333334
  %v925 = vmul.f32 %v871, 0.33333334
  %v926 = vmul.f32 %v873, 0.33333334
  %v927 = vmul.f32 %v875, 0.33333334
  %v928 = vmul.f32 %v877, 0.33333334
  %v929 = vmul.f32 %v879, 0.33333334
  %v930 = vmul.f32 %v881, 0.33333334
  %v931 = vmul.f32 %v883, 0.33333334
  %v932 = vmul.f32 %v885, 0.33333334
  %v933 = vmul.f32 %v887, 0.33333334
  %v934 = vmul.f32 %v889, 0.33333334
  %v935 = vmul.f32 %v891, 0.33333334
  %v936 = vmul.f32 %v893, 0.33333334
  %v937 = vmul.f32 %v895, 0.33333334
  %v938 = vmul.f32 %v897, 0.33333334
  %v939 = vmul.f32 %v899, 0.33333334
  %v940 = vmul.f32 %v901, 0.33333334
  %v941 = vmul.f32 %v903, 0.33333334
  %v942 = vmul.f32 %v905, 0.33333334
  %v943 = vmul.f32 %v907, 0.33333334
  %v944 = vmul.f32 %v909, 0.33333334
  %v945 = vmul.f32 %v911, 0.33333334
  %v946 = vmul.f32 %v913, 0.33333334
  %v947 = vmul.f32 %v915, 0.33333334
  %v948 = vmul.f32 %v916, 1.442695
  %v949 = vpow.pop %v948
  %v950 = vmul.f32 %v917, 1.442695
  %v951 = vpow.pop %v950
  %v952 = vmul.f32 %v918, 1.442695
  %v953 = vpow.pop %v952
  %v954 = vmul.f32 %v919, 1.442695
  %v955 = vpow.pop %v954
  %v956 = vmul.f32 %v920, 1.442695
  %v957 = vpow.pop %v956
  %v958 = vmul.f32 %v921, 1.442695
  %v959 = vpow.pop %v958
  %v960 = vmul.f32 %v922, 1.442695
  %v961 = vpow.pop %v960
  %v962 = vmul.f32 %v923, 1.442695
  %v963 = vpow.pop %v962
  %v964 = vmul.f32 %v924, 1.442695
  %v965 = vpow.pop %v964
  %v966 = vmul.f32 %v925, 1.442695
  %v967 = vpow.pop %v966
  %v968 = vmul.f32 %v926, 1.442695
  %v969 = vpow.pop %v968
  %v970 = vmul.f32 %v927, 1.442695
  %v971 = vpow.pop %v970
  %v972 = vmul.f32 %v928, 1.442695
  %v973 = vpow.pop %v972
  %v974 = vmul.f32 %v929, 1.442695
  %v975 = vpow.pop %v974
  %v976 = vmul.f32 %v930, 1.442695
  %v977 = vpow.pop %v976
  %v978 = vmul.f32 %v931, 1.442695
  %v979 = vpow.pop %v978
  %v980 = vmul.f32 %v932, 1.442695
  %v981 = vpow.pop %v980
  %v982 = vmul.f32 %v933, 1.442695
  %v983 = vpow.pop %v982
  %v984 = vmul.f32 %v934, 1.442695
  %v985 = vpow.pop %v984
  %v986 = vmul.f32 %v935, 1.442695
  %v987 = vpow.pop %v986
  %v988 = vmul.f32 %v936, 1.442695
  %v989 = vpow.pop %v988
  %v990 = vmul.f32 %v937, 1.442695
  %v991 = vpow.pop %v990
  %v992 = vmul.f32 %v938, 1.442695
  %v993 = vpow.pop %v992
  %v994 = vmul.f32 %v939, 1.442695
  %v995 = vpow.pop %v994
  %v996 = vmul.f32 %v940, 1.442695
  %v997 = vpow.pop %v996
  %v998 = vmul.f32 %v941, 1.442695
  %v999 = vpow.pop %v998
  %v1000 = vmul.f32 %v942, 1.442695
  %v1001 = vpow.pop %v1000
  %v1002 = vmul.f32 %v943, 1.442695
  %v1003 = vpow.pop %v1002
  %v1004 = vmul.f32 %v944, 1.442695
  %v1005 = vpow.pop %v1004
  %v1006 = vmul.f32 %v945, 1.442695
  %v1007 = vpow.pop %v1006
  %v1008 = vmul.f32 %v946, 1.442695
  %v1009 = vpow.pop %v1008
  %v1010 = vmul.f32 %v947, 1.442695
  %v1011 = vpow.pop %v1010
  %v1012 = vld [vmem:[%s3] sm:$0xff]
  %v1013 = vld [vmem:[%s3 + $0x8] sm:$0xff]
  %v1014 = vld [vmem:[%s3 + $0x10] sm:$0xff]
  %v1015 = vld [vmem:[%s3 + $0x18] sm:$0xff]
  %v1016 = vld [vmem:[%s4] sm:$0x1]
  %v1018 = vperm.slane %v1016, 0
  %v1052 = vlaneseq
  %v1053 = vand.u32 %v1052, 127
  %v1054 = vperm.slane %v949, %v1053
  %v1055 = vperm.slane %v951, %v1053
  %v1056 = vperm.slane %v953, %v1053
  %v1057 = vperm.slane %v955, %v1053
  %v1058 = vperm.slane %v957, %v1053
  %v1059 = vperm.slane %v959, %v1053
  %v1060 = vperm.slane %v961, %v1053
  %v1061 = vperm.slane %v963, %v1053
  %v1062 = vperm.slane %v965, %v1053
  %v1063 = vperm.slane %v967, %v1053
  %v1064 = vperm.slane %v969, %v1053
  %v1065 = vperm.slane %v971, %v1053
  %v1066 = vperm.slane %v973, %v1053
  %v1067 = vperm.slane %v975, %v1053
  %v1068 = vperm.slane %v977, %v1053
  %v1069 = vperm.slane %v979, %v1053
  %v1070 = vperm.slane %v981, %v1053
  %v1071 = vperm.slane %v983, %v1053
  %v1072 = vperm.slane %v985, %v1053
  %v1073 = vperm.slane %v987, %v1053
  %v1074 = vperm.slane %v989, %v1053
  %v1075 = vperm.slane %v991, %v1053
  %v1076 = vperm.slane %v993, %v1053
  %v1077 = vperm.slane %v995, %v1053
  %v1078 = vperm.slane %v997, %v1053
  %v1079 = vperm.slane %v999, %v1053
  %v1080 = vperm.slane %v1001, %v1053
  %v1081 = vperm.slane %v1003, %v1053
  %v1082 = vperm.slane %v1005, %v1053
  %v1083 = vperm.slane %v1007, %v1053
  %v1084 = vperm.slane %v1009, %v1053
  %v1085 = vperm.slane %v1011, %v1053
  %vm1086 = vcmask 1041409
  %v1087 = vsel %vm1086, %v1055, %v1054
  %vm1088 = vcmask 1042434
  %v1089 = vsel %vm1088, %v1056, %v1087
  %vm1090 = vcmask 1043459
  %v1091 = vsel %vm1090, %v1057, %v1089
  %vm1092 = vcmask 1044484
  %v1093 = vsel %vm1092, %v1058, %v1091
  %vm1094 = vcmask 1045509
  %v1095 = vsel %vm1094, %v1059, %v1093
  %vm1096 = vcmask 1046534
  %v1097 = vsel %vm1096, %v1060, %v1095
  %vm1098 = vcmask 1047559
  %v1099 = vsel %vm1098, %v1061, %v1097
  %v1100 = vsel %vm1086, %v1063, %v1062
  %v1101 = vsel %vm1088, %v1064, %v1100
  %v1102 = vsel %vm1090, %v1065, %v1101
  %v1103 = vsel %vm1092, %v1066, %v1102
  %v1104 = vsel %vm1094, %v1067, %v1103
  %v1105 = vsel %vm1096, %v1068, %v1104
  %v1106 = vsel %vm1098, %v1069, %v1105
  %v1107 = vsel %vm1086, %v1071, %v1070
  %v1108 = vsel %vm1088, %v1072, %v1107
  %v1109 = vsel %vm1090, %v1073, %v1108
  %v1110 = vsel %vm1092, %v1074, %v1109
  %v1111 = vsel %vm1094, %v1075, %v1110
  %v1112 = vsel %vm1096, %v1076, %v1111
  %v1113 = vsel %vm1098, %v1077, %v1112
  %v1114 = vsel %vm1086, %v1079, %v1078
  %v1115 = vsel %vm1088, %v1080, %v1114
  %v1116 = vsel %vm1090, %v1081, %v1115
  %v1117 = vsel %vm1092, %v1082, %v1116
  %v1118 = vsel %vm1094, %v1083, %v1117
  %v1119 = vsel %vm1096, %v1084, %v1118
  %v1120 = vsel %vm1098, %v1085, %v1119
  %1125 = vxpose.xlu0.b32.start [1/16] %v1099, 128
  %1126 = vxpose.xlu0.b32.cont [2/16] %v1106, 128
  %1127 = vxpose.xlu0.b32.cont [3/16] %v1113, 128
  %1128 = vxpose.xlu0.b32.cont [4/16] %v1120, 128
  %1129 = vxpose.xlu0.b32.cont [5/16] 0.0, 128
  %1130 = vxpose.xlu0.b32.cont [6/16] 0.0, 128
  %1131 = vxpose.xlu0.b32.cont [7/16] 0.0, 128
  %1132 = vxpose.xlu0.b32.cont [8/16] 0.0, 128
  %1133 = vxpose.xlu0.b32.cont [9/16] 0.0, 128
  %1134 = vxpose.xlu0.b32.cont [10/16] 0.0, 128
  %1135 = vxpose.xlu0.b32.cont [11/16] 0.0, 128
  %1136 = vxpose.xlu0.b32.cont [12/16] 0.0, 128
  %1137 = vxpose.xlu0.b32.cont [13/16] 0.0, 128
  %1138 = vxpose.xlu0.b32.cont [14/16] 0.0, 128
  %1139 = vxpose.xlu0.b32.cont [15/16] 0.0, 128
  %1140 = vxpose.xlu0.b32.end [16/16] 0.0, 128
  %v1141 = vpop.trf.xlu0
  %v1142 = vpop.trf.xlu0
  %v1143 = vpop.trf.xlu0
  %v1144 = vpop.trf.xlu0
  %v1145 = vpop.trf.xlu0
  %v1146 = vpop.trf.xlu0
  %v1147 = vpop.trf.xlu0
  %v1148 = vpop.trf.xlu0
  %v1149 = vpop.trf.xlu0
  %v1150 = vpop.trf.xlu0
  %v1151 = vpop.trf.xlu0
  %v1152 = vpop.trf.xlu0
  %v1153 = vpop.trf.xlu0
  %v1154 = vpop.trf.xlu0
  %v1155 = vpop.trf.xlu0
  %v1156 = vpop.trf.xlu0
  %v1158 = vsel %vm95, %v1141, 0
  %1160 = vmatpush.msra.mxu0 0.0
  %1161 = vmatpush.msra.mxu0 0.0
  %1162 = vmatpush.msra.mxu0 0.0
  %1163 = vmatpush.msra.mxu0 0.0
  %1164 = vmatpush.msra.mxu0 0.0
  %1165 = vmatpush.msra.mxu0 0.0
  %1166 = vmatpush.msra.mxu0 0.0
  %1167 = vmatpush.msra.mxu0 0.0
  %1168 = vmatpush.msra.mxu0 0.0
  %1169 = vmatpush.msra.mxu0 0.0
  %1170 = vmatpush.msra.mxu0 0.0
  %1171 = vmatpush.msra.mxu0 0.0
  %1172 = vmatpush.msra.mxu0 %v1015
  %1173 = vmatpush.msra.mxu0 %v1014
  %1174 = vmatpush.msra.mxu0 %v1013
  %1175 = vmatpush.msra.mxu0 %v1012
  %1176 = vmatmul.f32.gmra.mxu0 %v1158
  %v1177 = vpop.f32.mrf.mxu0
  %v1178 = vadd.f32 %v1018, %v1177
  %1179 = vdwg.mxu0
  %v1180 = vmul.f32 %v1178, %v1178
  %vm1181 = vcmask 254976
  %v1182 = vsel %vm1181, %v1180, 0.0
  %1183 = vadd.xlane.f32.xlu0 %v1182
  %v1184 = vpop.xlane.xlu0 %1183
  %v1185 = vadd.f32 %v1184, 1e-12
  %v1186 = vrsqrt.pop %v1185
  %v1187 = vmul.f32 %v1186, %v1185
  %v1188 = vmul.f32 %v1187, %v1186
  %v1189 = vmul.f32 0.5, %v1188
  %v1190 = vsub.f32 1.5, %v1189
  %v1191 = vmul.f32 %v1186, %v1190
  %vm1192 = vweird.f32 %v1185
  %vm1193 = vweird.f32 %v1186
  %vm1194 = vmor %vm1192, %vm1193
  %v1195 = vsel %vm1194, %v1186, %v1191
  %v1196 = vmul.f32 %v1178, %v1195
  %v1197 = vld [vmem:[%s5] sm:$0xff]
  %v1198 = vld [vmem:[%s5 + $0x8] sm:$0xff]
  %v1199 = vld [vmem:[%s5 + $0x10] sm:$0xff]
  %v1200 = vld [vmem:[%s5 + $0x18] sm:$0xff]
  %v1201 = vld [vmem:[%s6] sm:$0x1]
  %v1203 = vperm.slane %v1201, 0
  %v1206 = vsel %vm95, %v1196, 0
  %1208 = vmatpush.msra.mxu0 0.0
  %1209 = vmatpush.msra.mxu0 0.0
  %1210 = vmatpush.msra.mxu0 0.0
  %1211 = vmatpush.msra.mxu0 0.0
  %1212 = vmatpush.msra.mxu0 0.0
  %1213 = vmatpush.msra.mxu0 0.0
  %1214 = vmatpush.msra.mxu0 0.0
  %1215 = vmatpush.msra.mxu0 0.0
  %1216 = vmatpush.msra.mxu0 0.0
  %1217 = vmatpush.msra.mxu0 0.0
  %1218 = vmatpush.msra.mxu0 0.0
  %1219 = vmatpush.msra.mxu0 0.0
  %1220 = vmatpush.msra.mxu0 %v1200
  %1221 = vmatpush.msra.mxu0 %v1199
  %1222 = vmatpush.msra.mxu0 %v1198
  %1223 = vmatpush.msra.mxu0 %v1197
  %1224 = vmatmul.f32.gmra.mxu0 %v1206
  %v1225 = vpop.f32.mrf.mxu0
  %v1226 = vadd.f32 %v1203, %v1225
  %1227 = vdwg.mxu0
  %v1228 = vlaneseq
  %v1229 = vshrl.u32 %v1228, 7
  %v1230 = vsel %vm659, %v1226, -inf
  %1231 = vmax.xlane.f32.xlu0 %v1230
  %v1232 = vpop.xlane.xlu0 %1231
  %v1233 = vsub.f32 %v1226, %v1232
  %v1234 = vmul.f32 %v1233, 1.442695
  %v1235 = vpow.pop %v1234
  %v1236 = vsel %vm659, %v1235, 0.0
  %1237 = vadd.xlane.f32.xlu0 %v1236
  %v1238 = vpop.xlane.xlu0 %1237
  %v1239 = vlog2.pop %v1238
  %v1240 = vmul.f32 %v1239, 0.6931472
  %v1241 = vadd.f32 %v1240, %v1232
  %s1242 = smul.u32 0, 2
  %vm1243 = vcmp.eq.s32.totalorder %v1229, 0
  %s1244 = sld [smem:[#allocation3 + %s1242]]
  %v1245 = vstv %s1244
  %v1246 = vsel %vm1243, %v1245, 0
  %vm1247 = vcmp.eq.s32.totalorder %v1229, 1
  %s1248 = sadd.s32 %s1242, 1
  %s1249 = sld [smem:[#allocation3 + %s1248]]
  %v1250 = vstv %s1249
  %v1251 = vsel %vm1247, %v1250, %v1246
  %vm1252 = vcmp.eq.s32.totalorder %v1053, %v1251
  %v1253 = vsel %vm1252, 1, 0
  %v1254 = vcvt.s32.f32 %v1253
  %v1255 = vmul.f32 %v1254, %v1226
  %v1256 = vsel %vm659, %v1255, 0.0
  %1257 = vadd.xlane.f32.xlu0 %v1256
  %v1258 = vpop.xlane.xlu0 %1257
  %v1259 = vsub.f32 %v1241, %v1258
  %vm1260 = vcmp.eq.s32.totalorder %v1053, 10
  %v1261 = vsel %vm1260, %v1259, %v1226
  %1262 = vst [vmem:[%s7] sm:$0x3] %v1261
  // Predicated region
  $region26: #{cvnet_wrapper_forward.1} parent=0 // pred_check
    _
  $region27: #{cvnet_wrapper_forward.1} parent=0 // pred_check_branch
    %1264 = sbr.rel (0) target = $region29
  $region28: #{cvnet_wrapper_forward.1} parent=0 // pred_region
    _
  $region29: #{cvnet_wrapper_forward.1} parent=0 // pred_fallthru
    _
  // Predicated region
  $region30: #{cvnet_wrapper_forward.1} parent=0 // pred_check
    _
  $region31: #{cvnet_wrapper_forward.1} parent=0 // pred_check_branch
    %1266 = sbr.rel (0) target = $region33
  $region32: #{cvnet_wrapper_forward.1} parent=0 // pred_region
    _
  $region33: #{cvnet_wrapper_forward.1} parent=0 // pred_fallthru
    _

</llo_original>
